<compile_context>
chip_gen: v7x
topology: tpu7x:2x2x1
jax: 0.10.0
libtpu: 0.0.40
codegen_flags: <defaults>
</compile_context>

<pallas_src>
import functools

import jax
import jax.numpy as jnp
from jax.experimental import pallas as pl
from jax.experimental.pallas import tpu as pltpu


# ----------------------------- activations --------------------------------- #
def _sigmoid_tanh(x):
    return jax.nn.sigmoid(jnp.tanh(x))


def get_activation_function(name):
    if name == "tanh":
        return jnp.tanh
    elif name == "sin":
        return jnp.sin
    elif name == "relu":
        return lambda x: jnp.maximum(x, 0.0)
    elif name == "sigmoid":
        return jax.nn.sigmoid
    elif name == "sigmoid(tanh)":
        return _sigmoid_tanh
    else:
        raise ValueError(f"Unsupported activation function: {name}")


_SMALL_K = 4  # contractions this small skip the MXU (VPU outer-product instead)


# ------------------------------- kernel ------------------------------------ #
def _mlp_pinn_kernel(*refs, n_layers, hidden_act, output_act, compute_dtype):
    """refs = (x_ref, w0, b0, ..., w_{L-1}, b_{L-1}, o_ref).

    x_ref : [d_in,  tile_n]   (batch on lanes)
    w_l   : [out_l, in_l]     (PyTorch-native layout)
    b_l   : [out_l, 1]
    o_ref : [d_out, tile_n]   (lane-dense store)
    """
    x_ref = refs[0]
    o_ref = refs[-1]
    wb = refs[1:-1]

    act = get_activation_function(hidden_act)

    h = x_ref[...].astype(compute_dtype)                    # [d_in, tile_n]
    for layer in range(n_layers):
        w = wb[2 * layer][...]                              # [out, in]
        b = wb[2 * layer + 1][...].astype(jnp.float32)      # [out, 1]
        k = w.shape[1]
        if k <= _SMALL_K:
            # Degenerate contraction (e.g. d_in == 2): VPU outer product,
            # avoids MXU pipeline fill/drain for a handful of FLOPs.
            z = w[:, 0:1].astype(jnp.float32) * h[0:1, :].astype(jnp.float32)
            for kk in range(1, k):
                z = z + (w[:, kk:kk + 1].astype(jnp.float32)
                         * h[kk:kk + 1, :].astype(jnp.float32))
            z = z + b
        else:
            z = jnp.dot(w.astype(compute_dtype), h.astype(compute_dtype),
                        preferred_element_type=jnp.float32) + b
        if layer < n_layers - 1:
            h = act(z).astype(compute_dtype)
        else:
            if output_act is not None:
                z = get_activation_function(output_act)(z)
            h = z

    o_ref[...] = h.astype(o_ref.dtype)                      # lane-dense write


# ------------------------------ wrapper ------------------------------------ #
def mlp_pinn_forward(x, weights, biases, *, hidden_activation="tanh",
                     output_activation=None, tile_n=512,
                     compute_dtype=jnp.float32):
    """Fused MLP forward.

    x:       [N, D_in]                float32
    weights: list of [out, in]        (PyTorch-native nn.Linear weight)
    biases:  list of [out]
    returns: [N, D_out]

    compute_dtype=jnp.bfloat16 may be used on v6e/v7x for extra EUP/VPU
    throughput (accumulation stays f32); keep f32 on v5e.
    """
    n, d_in = x.shape
    n_layers = len(weights)
    d_out = weights[-1].shape[0]

    # Lane-aligned batch tile; never tile wider than the (128-padded) problem.
    n_min = pl.cdiv(n, 128) * 128
    tile_n = max(128, min(int(tile_n), n_min))
    tile_n = pl.cdiv(tile_n, 128) * 128
    n_pad = pl.cdiv(n, tile_n) * tile_n

    # Batch-on-lanes layout: features on sublanes, collocation points on lanes.
    x_t = x.T                                               # [d_in, N]
    if n_pad != n:
        # TODO(synk): a masked final tile would avoid this pad copy for huge N.
        x_t = jnp.pad(x_t, ((0, 0), (0, n_pad - n)))

    biases2d = [b.reshape(-1, 1) for b in biases]           # [out, 1]

    grid = (n_pad // tile_n,)

    in_specs = [pl.BlockSpec((d_in, tile_n), lambda i: (0, i))]
    operands = [x_t]
    for w, b in zip(weights, biases2d):
        in_specs.append(pl.BlockSpec(w.shape, lambda i: (0, 0)))  # resident in VMEM
        in_specs.append(pl.BlockSpec(b.shape, lambda i: (0, 0)))
        operands.append(w)
        operands.append(b)

    out_spec = pl.BlockSpec((d_out, tile_n), lambda i: (0, i))

    kernel = functools.partial(
        _mlp_pinn_kernel,
        n_layers=n_layers,
        hidden_act=hidden_activation,
        output_act=output_activation,
        compute_dtype=compute_dtype,
    )

    flops = 2 * n_pad * sum(int(w.shape[0]) * int(w.shape[1]) for w in weights)
    transcendentals = n_pad * sum(int(w.shape[0]) for w in weights[:-1])
    bytes_accessed = (
        int(x_t.size) * x_t.dtype.itemsize
        + n_pad * d_out * x.dtype.itemsize
        + sum(int(w.size) * w.dtype.itemsize for w in weights)
        + sum(int(b.size) * b.dtype.itemsize for b in biases)
    )

    out_t = pl.pallas_call(
        kernel,
        out_shape=jax.ShapeDtypeStruct((d_out, n_pad), x.dtype),
        grid_spec=pltpu.PrefetchScalarGridSpec(
            num_scalar_prefetch=0,
            grid=grid,
            in_specs=in_specs,
            out_specs=out_spec,
        ),
        compiler_params=pltpu.CompilerParams(
            dimension_semantics=("parallel",)),
        cost_estimate=pl.CostEstimate(
            flops=flops,
            transcendentals=transcendentals,
            bytes_accessed=bytes_accessed),
    )(*operands)

    return out_t[:, :n].T                                   # [N, d_out]


# --------------------------- parameter init --------------------------------- #
def init_mlp_params(key, input_dims, hidden_neurons_list, output_dims):
    """Mimics nn.Linear default init: uniform(-1/sqrt(fan_in), 1/sqrt(fan_in))."""
    dims = [input_dims] + list(hidden_neurons_list) + [output_dims]
    weights, biases = [], []
    for i in range(len(dims) - 1):
        fan_in, fan_out = dims[i], dims[i + 1]
        key, kw, kb = jax.random.split(key, 3)
        bound = 1.0 / (float(fan_in) ** 0.5)
        # PyTorch-native layout: [out, in]
        w = jax.random.uniform(kw, (fan_out, fan_in), jnp.float32, -bound, bound)
        b = jax.random.uniform(kb, (fan_out,), jnp.float32, -bound, bound)
        weights.append(w)
        biases.append(b)
    return weights, biases


# ------------------------------- reference ---------------------------------- #
def mlp_pinn_reference(x, weights, biases, hidden_activation, output_activation):
    act = get_activation_function(hidden_activation)
    h = x
    for i, (w, b) in enumerate(zip(weights, biases)):
        h = h @ w.T + b
        if i < len(weights) - 1:
            h = act(h)
        elif output_activation:
            h = get_activation_function(output_activation)(h)
    return h


# ---------------------------------- main ------------------------------------ #
if __name__ == "__main__":
    # net_settings equivalent
    input_dims = 2
    hidden_neurons_list = [32, 32, 32]
    output_dims = 1
    hidden_activation = "tanh"
    output_activation = None  # falsy net_settings.output_activation -> no output act

    key = jax.random.PRNGKey(0)
    key, kx = jax.random.split(key)
    N = 300  # not a multiple of 128 -> exercises the padded/ragged last tile
    x = jax.random.normal(kx, (N, input_dims), jnp.float32)

    weights, biases = init_mlp_params(key, input_dims, hidden_neurons_list, output_dims)

    y = mlp_pinn_forward(
        x, weights, biases,
        hidden_activation=hidden_activation,
        output_activation=output_activation,
        tile_n=512,
    )
    y = jax.block_until_ready(y)

    y_ref = mlp_pinn_reference(x, weights, biases, hidden_activation, output_activation)
    assert y.shape == (N, output_dims), y.shape
    err = float(jnp.max(jnp.abs(y - y_ref)))
    assert jnp.allclose(y, y_ref, atol=1e-5, rtol=1e-5), err

    print("KERNEL_OK")
</pallas_src>

<mosaic_0001>
module attributes {stable_mosaic.version = 11 : i64} {
  func.func @_mlp_pinn_kernel(%arg0: i32, %arg1: memref<2x384xf32, #tpu.memory_space<vmem>>, %arg2: memref<32x2xf32, #tpu.memory_space<vmem>>, %arg3: memref<32x1xf32, #tpu.memory_space<vmem>>, %arg4: memref<32x32xf32, #tpu.memory_space<vmem>>, %arg5: memref<32x1xf32, #tpu.memory_space<vmem>>, %arg6: memref<32x32xf32, #tpu.memory_space<vmem>>, %arg7: memref<32x1xf32, #tpu.memory_space<vmem>>, %arg8: memref<1x32xf32, #tpu.memory_space<vmem>>, %arg9: memref<1x1xf32, #tpu.memory_space<vmem>>, %arg10: memref<1x384xf32, #tpu.memory_space<vmem>>) attributes {dimension_semantics = [#tpu.dimension_semantics<parallel>], iteration_bounds = array<i64: 1>, scalar_prefetch = 0 : i64, scratch_operands = 0 : i64, tpu.core_type = #tpu.core_type<tc>, window_params = [{transform_indices = @transform_0, window_bounds = array<i64: 2, 384>}, {pipeline_mode = #tpu.pipeline_mode<synchronous>, transform_indices = @transform_1, window_bounds = array<i64: 32, 2>}, {pipeline_mode = #tpu.pipeline_mode<synchronous>, transform_indices = @transform_2, window_bounds = array<i64: 32, 1>}, {pipeline_mode = #tpu.pipeline_mode<synchronous>, transform_indices = @transform_3, window_bounds = array<i64: 32, 32>}, {pipeline_mode = #tpu.pipeline_mode<synchronous>, transform_indices = @transform_4, window_bounds = array<i64: 32, 1>}, {pipeline_mode = #tpu.pipeline_mode<synchronous>, transform_indices = @transform_5, window_bounds = array<i64: 32, 32>}, {pipeline_mode = #tpu.pipeline_mode<synchronous>, transform_indices = @transform_6, window_bounds = array<i64: 32, 1>}, {pipeline_mode = #tpu.pipeline_mode<synchronous>, transform_indices = @transform_7, window_bounds = array<i64: 1, 32>}, {pipeline_mode = #tpu.pipeline_mode<synchronous>, transform_indices = @transform_8, window_bounds = array<i64: 1, 1>}, {transform_indices = @transform_9, window_bounds = array<i64: 1, 384>}]} {
    %c0 = arith.constant 0 : index
    %c0_0 = arith.constant 0 : index
    %0 = vector.load %arg1[%c0, %c0_0] : memref<2x384xf32, #tpu.memory_space<vmem>>, vector<2x384xf32>
    %c0_1 = arith.constant 0 : index
    %c0_2 = arith.constant 0 : index
    %1 = vector.load %arg2[%c0_1, %c0_2] : memref<32x2xf32, #tpu.memory_space<vmem>>, vector<32x2xf32>
    %c0_3 = arith.constant 0 : index
    %c0_4 = arith.constant 0 : index
    %2 = vector.load %arg3[%c0_3, %c0_4] : memref<32x1xf32, #tpu.memory_space<vmem>>, vector<32x1xf32>
    %3 = vector.extract_strided_slice %1 {offsets = [0, 0], sizes = [32, 1], strides = [1, 1]} : vector<32x2xf32> to vector<32x1xf32>
    %4 = vector.extract_strided_slice %0 {offsets = [0, 0], sizes = [1, 384], strides = [1, 1]} : vector<2x384xf32> to vector<1x384xf32>
    %5 = vector.broadcast %3 : vector<32x1xf32> to vector<32x384xf32>
    %6 = vector.broadcast %4 : vector<1x384xf32> to vector<32x384xf32>
    %7 = arith.mulf %5, %6 : vector<32x384xf32>
    %8 = vector.extract_strided_slice %1 {offsets = [0, 1], sizes = [32, 1], strides = [1, 1]} : vector<32x2xf32> to vector<32x1xf32>
    %9 = vector.extract_strided_slice %0 {offsets = [1, 0], sizes = [1, 384], strides = [1, 1]} : vector<2x384xf32> to vector<1x384xf32>
    %10 = vector.broadcast %8 : vector<32x1xf32> to vector<32x384xf32>
    %11 = vector.broadcast %9 : vector<1x384xf32> to vector<32x384xf32>
    %12 = arith.mulf %10, %11 : vector<32x384xf32>
    %13 = arith.addf %7, %12 : vector<32x384xf32>
    %14 = vector.broadcast %2 : vector<32x1xf32> to vector<32x384xf32>
    %15 = arith.addf %13, %14 : vector<32x384xf32>
    %16 = math.tanh %15 : vector<32x384xf32>
    %c0_5 = arith.constant 0 : index
    %c0_6 = arith.constant 0 : index
    %17 = vector.load %arg4[%c0_5, %c0_6] : memref<32x32xf32, #tpu.memory_space<vmem>>, vector<32x32xf32>
    %c0_7 = arith.constant 0 : index
    %c0_8 = arith.constant 0 : index
    %18 = vector.load %arg5[%c0_7, %c0_8] : memref<32x1xf32, #tpu.memory_space<vmem>>, vector<32x1xf32>
    %cst = arith.constant dense<0.000000e+00> : vector<32x384xf32>
    %19 = tpu.matmul %17, %16, %cst {dimension_numbers = #tpu.dot_dimension_numbers<[1], [0], [0], [1], [0, 0, 1, 1], [], []>} : vector<32x32xf32>, vector<32x384xf32>, vector<32x384xf32> -> vector<32x384xf32>
    %20 = vector.broadcast %18 : vector<32x1xf32> to vector<32x384xf32>
    %21 = arith.addf %19, %20 : vector<32x384xf32>
    %22 = math.tanh %21 : vector<32x384xf32>
    %c0_9 = arith.constant 0 : index
    %c0_10 = arith.constant 0 : index
    %23 = vector.load %arg6[%c0_9, %c0_10] : memref<32x32xf32, #tpu.memory_space<vmem>>, vector<32x32xf32>
    %c0_11 = arith.constant 0 : index
    %c0_12 = arith.constant 0 : index
    %24 = vector.load %arg7[%c0_11, %c0_12] : memref<32x1xf32, #tpu.memory_space<vmem>>, vector<32x1xf32>
    %cst_13 = arith.constant dense<0.000000e+00> : vector<32x384xf32>
    %25 = tpu.matmul %23, %22, %cst_13 {dimension_numbers = #tpu.dot_dimension_numbers<[1], [0], [0], [1], [0, 0, 1, 1], [], []>} : vector<32x32xf32>, vector<32x384xf32>, vector<32x384xf32> -> vector<32x384xf32>
    %26 = vector.broadcast %24 : vector<32x1xf32> to vector<32x384xf32>
    %27 = arith.addf %25, %26 : vector<32x384xf32>
    %28 = math.tanh %27 : vector<32x384xf32>
    %c0_14 = arith.constant 0 : index
    %c0_15 = arith.constant 0 : index
    %29 = vector.load %arg8[%c0_14, %c0_15] : memref<1x32xf32, #tpu.memory_space<vmem>>, vector<1x32xf32>
    %c0_16 = arith.constant 0 : index
    %c0_17 = arith.constant 0 : index
    %30 = vector.load %arg9[%c0_16, %c0_17] : memref<1x1xf32, #tpu.memory_space<vmem>>, vector<1x1xf32>
    %cst_18 = arith.constant dense<0.000000e+00> : vector<1x384xf32>
    %31 = tpu.matmul %29, %28, %cst_18 {dimension_numbers = #tpu.dot_dimension_numbers<[1], [0], [0], [1], [0, 0, 1, 1], [], []>} : vector<1x32xf32>, vector<32x384xf32>, vector<1x384xf32> -> vector<1x384xf32>
    %32 = vector.broadcast %30 : vector<1x1xf32> to vector<1x384xf32>
    %33 = arith.addf %31, %32 : vector<1x384xf32>
    %c0_19 = arith.constant 0 : index
    %c0_20 = arith.constant 0 : index
    %34 = vector.load %arg10[%c0_19, %c0_20] : memref<1x384xf32, #tpu.memory_space<vmem>>, vector<1x384xf32>
    tpu.vector_store %arg10[%c0_19, %c0_20], %33 {strides = array<i32>} : memref<1x384xf32, #tpu.memory_space<vmem>>, vector<1x384xf32>,
    return
  }
  func.func @transform_0(%arg0: i32) -> (i32, i32) {
    %c0_i32 = arith.constant 0 : i32
    %c0_i32_0 = arith.constant 0 : i32
    return %c0_i32, %arg0 : i32, i32
  }
  func.func @transform_1(%arg0: i32) -> (i32, i32) {
    %c0_i32 = arith.constant 0 : i32
    %c0_i32_0 = arith.constant 0 : i32
    %c0_i32_1 = arith.constant 0 : i32
    return %c0_i32, %c0_i32_0 : i32, i32
  }
  func.func @transform_2(%arg0: i32) -> (i32, i32) {
    %c0_i32 = arith.constant 0 : i32
    %c0_i32_0 = arith.constant 0 : i32
    %c0_i32_1 = arith.constant 0 : i32
    return %c0_i32, %c0_i32_0 : i32, i32
  }
  func.func @transform_3(%arg0: i32) -> (i32, i32) {
    %c0_i32 = arith.constant 0 : i32
    %c0_i32_0 = arith.constant 0 : i32
    %c0_i32_1 = arith.constant 0 : i32
    return %c0_i32, %c0_i32_0 : i32, i32
  }
  func.func @transform_4(%arg0: i32) -> (i32, i32) {
    %c0_i32 = arith.constant 0 : i32
    %c0_i32_0 = arith.constant 0 : i32
    %c0_i32_1 = arith.constant 0 : i32
    return %c0_i32, %c0_i32_0 : i32, i32
  }
  func.func @transform_5(%arg0: i32) -> (i32, i32) {
    %c0_i32 = arith.constant 0 : i32
    %c0_i32_0 = arith.constant 0 : i32
    %c0_i32_1 = arith.constant 0 : i32
    return %c0_i32, %c0_i32_0 : i32, i32
  }
  func.func @transform_6(%arg0: i32) -> (i32, i32) {
    %c0_i32 = arith.constant 0 : i32
    %c0_i32_0 = arith.constant 0 : i32
    %c0_i32_1 = arith.constant 0 : i32
    return %c0_i32, %c0_i32_0 : i32, i32
  }
  func.func @transform_7(%arg0: i32) -> (i32, i32) {
    %c0_i32 = arith.constant 0 : i32
    %c0_i32_0 = arith.constant 0 : i32
    %c0_i32_1 = arith.constant 0 : i32
    return %c0_i32, %c0_i32_0 : i32, i32
  }
  func.func @transform_8(%arg0: i32) -> (i32, i32) {
    %c0_i32 = arith.constant 0 : i32
    %c0_i32_0 = arith.constant 0 : i32
    %c0_i32_1 = arith.constant 0 : i32
    return %c0_i32, %c0_i32_0 : i32, i32
  }
  func.func @transform_9(%arg0: i32) -> (i32, i32) {
    %c0_i32 = arith.constant 0 : i32
    %c0_i32_0 = arith.constant 0 : i32
    return %c0_i32, %arg0 : i32, i32
  }
}

</mosaic_0001>

<llo_original>
// kernel: tpu_custom_call.1
$region0: #{tpu_custom_call.1}
  #allocation0 [shape = 'u32[]', space=smem, size = 0x4, offset = 0x4, fixed_abs, tag = 'smem constant byte address 0x4 - core index']
  #allocation1 [shape = 'u32[144,128]{1,0:T(1,128)}', space=vmem, size = 0x12000, scoped, tag = 'internal scratch']
  #allocation2 [shape = 'f32[1,1]{1,0:T(1,128)S(1)}', space=vmem, size = 0x200, scoped, tag = 'scoped memory for tpu_custom_call.1']
  %s0 = inlined_call_operand.vmem [shape: f32[2,384], index: 0, kind: input, shape index: {}]
  %s1 = inlined_call_operand.vmem [shape: f32[32,2], index: 1, kind: input, shape index: {}]
  %s2 = inlined_call_operand.vmem [shape: f32[32,1], index: 2, kind: input, shape index: {}]
  %s3 = inlined_call_operand.vmem [shape: f32[32,32], index: 3, kind: input, shape index: {}]
  %s4 = inlined_call_operand.vmem [shape: f32[32,1], index: 4, kind: input, shape index: {}]
  %s5 = inlined_call_operand.vmem [shape: f32[32,32], index: 5, kind: input, shape index: {}]
  %s6 = inlined_call_operand.vmem [shape: f32[32,1], index: 6, kind: input, shape index: {}]
  %s7 = inlined_call_operand.vmem [shape: f32[1,32], index: 7, kind: input, shape index: {}]
  %s8 = inlined_call_operand.<no memory space> [shape: f32[1,1], index: 8, kind: input, shape index: {}]
  %s9 = inlined_call_operand.hbm [shape: f32[1,384], index: 9, kind: output, shape index: {}]
  %s10 = sld [smem:[#allocation0]]
  $region46: #{tpu_custom_call.1} parent=0
    _
  %s12 = ssub.s32 1, %s10
  %s13 = scalar_select 0, %s12, %s10
  %v14 = vstv %s8
  %15 = vst [vmem:[#allocation2] sm:$0x1] %v14
  $region1: #{tpu_custom_call.1} parent=0
    #allocation3 [shape = 'u8[1536]{0}', space=vmem, size = 0x800, scoped, tag = 'output window, operand 0, single buffered']
    #allocation4 [shape = 's32[1]{0}', space=sflag, size = 0x4, scoped, tag = 'scoped memory for tpu_custom_call.1']
    %16 = vsyncpa [#allocation4], 0
    // Predicated region
    $region2: #{tpu_custom_call.1} parent=1 // pred_check
      _
    $region3: #{tpu_custom_call.1} parent=1 // pred_check_branch
      %18 = sbr.rel (0) target = $region5
    $region4: #{tpu_custom_call.1} parent=1 // pred_region
      _
    $region5: #{tpu_custom_call.1} parent=1 // pred_fallthru
      _
    // Predicated region
    $region6: #{tpu_custom_call.1} parent=1 // pred_check
      _
    $region7: #{tpu_custom_call.1} parent=1 // pred_check_branch
      %20 = sbr.rel (0) target = $region9
    $region8: #{tpu_custom_call.1} parent=1 // pred_region
      _
    $region9: #{tpu_custom_call.1} parent=1 // pred_fallthru
      _
    // Predicated region
    $region10: #{tpu_custom_call.1} parent=1 // pred_check
      _
    $region11: #{tpu_custom_call.1} parent=1 // pred_check_branch
      %22 = sbr.rel (0) target = $region13
    $region12: #{tpu_custom_call.1} parent=1 // pred_region
      _
    $region13: #{tpu_custom_call.1} parent=1 // pred_fallthru
      _
    // Predicated region
    $region14: #{tpu_custom_call.1} parent=1 // pred_check
      _
    $region15: #{tpu_custom_call.1} parent=1 // pred_check_branch
      %24 = sbr.rel (0) target = $region17
    $region16: #{tpu_custom_call.1} parent=1 // pred_region
      _
    $region17: #{tpu_custom_call.1} parent=1 // pred_fallthru
      _
    // Predicated region
    $region18: #{tpu_custom_call.1} parent=1 // pred_check
      _
    $region19: #{tpu_custom_call.1} parent=1 // pred_check_branch
      %26 = sbr.rel (0) target = $region21
    $region20: #{tpu_custom_call.1} parent=1 // pred_region
      _
    $region21: #{tpu_custom_call.1} parent=1 // pred_fallthru
      _
    // Predicated region
    $region22: #{tpu_custom_call.1} parent=1 // pred_check
      _
    $region23: #{tpu_custom_call.1} parent=1 // pred_check_branch
      %28 = sbr.rel (0) target = $region25
    $region24: #{tpu_custom_call.1} parent=1 // pred_region
      _
    $region25: #{tpu_custom_call.1} parent=1 // pred_fallthru
      _
    // Predicated region
    $region26: #{tpu_custom_call.1} parent=1 // pred_check
      _
    $region27: #{tpu_custom_call.1} parent=1 // pred_check_branch
      %30 = sbr.rel (0) target = $region29
    $region28: #{tpu_custom_call.1} parent=1 // pred_region
      _
    $region29: #{tpu_custom_call.1} parent=1 // pred_fallthru
      _
    // Predicated region
    $region30: #{tpu_custom_call.1} parent=1 // pred_check
      _
    $region31: #{tpu_custom_call.1} parent=1 // pred_check_branch
      %32 = sbr.rel (0) target = $region33
    $region32: #{tpu_custom_call.1} parent=1 // pred_region
      _
    $region33: #{tpu_custom_call.1} parent=1 // pred_fallthru
      _
    // Predicated region
    $region34: #{tpu_custom_call.1} parent=1 // pred_check
      _
    $region35: #{tpu_custom_call.1} parent=1 // pred_check_branch
      %34 = sbr.rel (0) target = $region37
    $region36: #{tpu_custom_call.1} parent=1 // pred_region
      _
    $region37: #{tpu_custom_call.1} parent=1 // pred_fallthru
      _
    %v35 = vld [vmem:[%s0] sm:$0x3f]
    %v36 = vld [vmem:[%s1] sm:$0xff]
    %v37 = vld [vmem:[%s1 + $0x8] sm:$0xff]
    %v38 = vld [vmem:[%s1 + $0x10] sm:$0xff]
    %v39 = vld [vmem:[%s1 + $0x18] sm:$0xff]
    %v40 = vld [vmem:[%s2] sm:$0xff]
    %v41 = vld [vmem:[%s2 + $0x8] sm:$0xff]
    %v42 = vld [vmem:[%s2 + $0x10] sm:$0xff]
    %v43 = vld [vmem:[%s2 + $0x18] sm:$0xff]
    %45 = vset.pattern.permute.xlu0 0
    %46 = vperm.xlu0 %45, %v36
    %v47 = vpop.permute.xlu0 %46
    %50 = vset.pattern.permute.xlu0 0
    %51 = vperm.xlu0 %50, %v37
    %v52 = vpop.permute.xlu0 %51
    %55 = vset.pattern.permute.xlu0 0
    %56 = vperm.xlu0 %55, %v38
    %v57 = vpop.permute.xlu0 %56
    %60 = vset.pattern.permute.xlu0 0
    %61 = vperm.xlu0 %60, %v39
    %v62 = vpop.permute.xlu0 %61
    %v65 = vlaneseq
    %v66 = vshrl.u32 %v65, 7
    %v67 = vsub.s32 0, %v66
    %v68 = vrot.slane %v35, %v67
    %v69 = vlaneseq
    %v70 = vshrl.u32 %v69, 7
    %v71 = vsub.s32 2, %v70
    %v72 = vrot.slane %v35, %v71
    %v73 = vlaneseq
    %v74 = vshrl.u32 %v73, 7
    %v75 = vsub.s32 4, %v74
    %v76 = vrot.slane %v35, %v75
    %v80 = vlaneseq
    %v81 = vshrl.u32 %v80, 7
    %v82 = vsub.s32 0, %v81
    %v83 = vrot.slane %v68, %v82
    %v84 = vlaneseq
    %v85 = vshrl.u32 %v84, 7
    %v86 = vsub.s32 0, %v85
    %v87 = vrot.slane %v72, %v86
    %v88 = vlaneseq
    %v89 = vshrl.u32 %v88, 7
    %v90 = vsub.s32 0, %v89
    %v91 = vrot.slane %v76, %v90
    %v92 = vmul.f32 %v47, %v83
    %v93 = vmul.f32 %v47, %v87
    %v94 = vmul.f32 %v47, %v91
    %v95 = vmul.f32 %v52, %v83
    %v96 = vmul.f32 %v52, %v87
    %v97 = vmul.f32 %v52, %v91
    %v98 = vmul.f32 %v57, %v83
    %v99 = vmul.f32 %v57, %v87
    %v100 = vmul.f32 %v57, %v91
    %v101 = vmul.f32 %v62, %v83
    %v102 = vmul.f32 %v62, %v87
    %v103 = vmul.f32 %v62, %v91
    %104 = vset.pattern.permute.xlu0 1
    %105 = vperm.xlu0 %104, %v36
    %v106 = vpop.permute.xlu0 %105
    %108 = vset.pattern.permute.xlu0 1
    %109 = vperm.xlu0 %108, %v37
    %v110 = vpop.permute.xlu0 %109
    %112 = vset.pattern.permute.xlu0 1
    %113 = vperm.xlu0 %112, %v38
    %v114 = vpop.permute.xlu0 %113
    %116 = vset.pattern.permute.xlu0 1
    %117 = vperm.xlu0 %116, %v39
    %v118 = vpop.permute.xlu0 %117
    %v120 = vlaneseq
    %v121 = vshrl.u32 %v120, 7
    %v122 = vsub.s32 1, %v121
    %v123 = vrot.slane %v35, %v122
    %v124 = vlaneseq
    %v125 = vshrl.u32 %v124, 7
    %v126 = vsub.s32 3, %v125
    %v127 = vrot.slane %v35, %v126
    %v128 = vlaneseq
    %v129 = vshrl.u32 %v128, 7
    %v130 = vsub.s32 5, %v129
    %v131 = vrot.slane %v35, %v130
    %v135 = vlaneseq
    %v136 = vshrl.u32 %v135, 7
    %v137 = vsub.s32 1, %v136
    %v138 = vrot.slane %v123, %v137
    %v139 = vlaneseq
    %v140 = vshrl.u32 %v139, 7
    %v141 = vsub.s32 1, %v140
    %v142 = vrot.slane %v127, %v141
    %v143 = vlaneseq
    %v144 = vshrl.u32 %v143, 7
    %v145 = vsub.s32 1, %v144
    %v146 = vrot.slane %v131, %v145
    %v147 = vmul.f32 %v106, %v138
    %v148 = vmul.f32 %v106, %v142
    %v149 = vmul.f32 %v106, %v146
    %v150 = vmul.f32 %v110, %v138
    %v151 = vmul.f32 %v110, %v142
    %v152 = vmul.f32 %v110, %v146
    %v153 = vmul.f32 %v114, %v138
    %v154 = vmul.f32 %v114, %v142
    %v155 = vmul.f32 %v114, %v146
    %v156 = vmul.f32 %v118, %v138
    %v157 = vmul.f32 %v118, %v142
    %v158 = vmul.f32 %v118, %v146
    %v159 = vadd.f32 %v92, %v147
    %v160 = vadd.f32 %v93, %v148
    %v161 = vadd.f32 %v94, %v149
    %v162 = vadd.f32 %v95, %v150
    %v163 = vadd.f32 %v96, %v151
    %v164 = vadd.f32 %v97, %v152
    %v165 = vadd.f32 %v98, %v153
    %v166 = vadd.f32 %v99, %v154
    %v167 = vadd.f32 %v100, %v155
    %v168 = vadd.f32 %v101, %v156
    %v169 = vadd.f32 %v102, %v157
    %v170 = vadd.f32 %v103, %v158
    %172 = vset.pattern.permute.xlu0 0
    %173 = vperm.xlu0 %172, %v40
    %v174 = vpop.permute.xlu0 %173
    %177 = vset.pattern.permute.xlu0 0
    %178 = vperm.xlu0 %177, %v41
    %v179 = vpop.permute.xlu0 %178
    %182 = vset.pattern.permute.xlu0 0
    %183 = vperm.xlu0 %182, %v42
    %v184 = vpop.permute.xlu0 %183
    %187 = vset.pattern.permute.xlu0 0
    %188 = vperm.xlu0 %187, %v43
    %v189 = vpop.permute.xlu0 %188
    %v191 = vadd.f32 %v159, %v174
    %v192 = vadd.f32 %v160, %v174
    %v193 = vadd.f32 %v161, %v174
    %v194 = vadd.f32 %v162, %v179
    %v195 = vadd.f32 %v163, %v179
    %v196 = vadd.f32 %v164, %v179
    %v197 = vadd.f32 %v165, %v184
    %v198 = vadd.f32 %v166, %v184
    %v199 = vadd.f32 %v167, %v184
    %v200 = vadd.f32 %v168, %v189
    %v201 = vadd.f32 %v169, %v189
    %v202 = vadd.f32 %v170, %v189
    %v203 = vtanh.pop %v191
    %v204 = vtanh.pop %v192
    %v205 = vtanh.pop %v193
    %v206 = vtanh.pop %v194
    %v207 = vtanh.pop %v195
    %v208 = vtanh.pop %v196
    %v209 = vtanh.pop %v197
    %v210 = vtanh.pop %v198
    %v211 = vtanh.pop %v199
    %v212 = vtanh.pop %v200
    %v213 = vtanh.pop %v201
    %v214 = vtanh.pop %v202
    %v215 = vld [vmem:[%s3] sm:$0xff]
    %v216 = vld [vmem:[%s3 + $0x8] sm:$0xff]
    %v217 = vld [vmem:[%s3 + $0x10] sm:$0xff]
    %v218 = vld [vmem:[%s3 + $0x18] sm:$0xff]
    %v219 = vld [vmem:[%s4] sm:$0xff]
    %v220 = vld [vmem:[%s4 + $0x8] sm:$0xff]
    %v221 = vld [vmem:[%s4 + $0x10] sm:$0xff]
    %v222 = vld [vmem:[%s4 + $0x18] sm:$0xff]
    %224 = vset.pattern.permute.xlu0 0
    %225 = vperm.xlu0 %224, %v219
    %v226 = vpop.permute.xlu0 %225
    %229 = vset.pattern.permute.xlu0 0
    %230 = vperm.xlu0 %229, %v220
    %v231 = vpop.permute.xlu0 %230
    %234 = vset.pattern.permute.xlu0 0
    %235 = vperm.xlu0 %234, %v221
    %v236 = vpop.permute.xlu0 %235
    %239 = vset.pattern.permute.xlu0 0
    %240 = vperm.xlu0 %239, %v222
    %v241 = vpop.permute.xlu0 %240
    %vm243 = vcmask 261120
    %v245 = vsel %vm243, %v215, 0
    %v248 = vsel %vm243, %v216, 0
    %v251 = vsel %vm243, %v217, 0
    %v254 = vsel %vm243, %v218, 0
    %256 = vmatprep.subr.mxu0 %v204
    %257 = vmatpush1.msra.mxu0 %v203
    %258 = vmatprep.subr.mxu0 %v207
    %259 = vmatpush1.msra.mxu0 %v206
    %260 = vmatprep.subr.mxu0 %v210
    %261 = vmatpush1.msra.mxu0 %v209
    %262 = vmatprep.subr.mxu0 %v213
    %263 = vmatpush1.msra.mxu0 %v212
    %264 = vmatprep.subr.mxu0 0.0
    %265 = vmatpush1.msra.mxu0 0.0
    %266 = vmatprep.subr.mxu0 0.0
    %267 = vmatpush1.msra.mxu0 0.0
    %268 = vmatprep.subr.mxu0 0.0
    %269 = vmatpush1.msra.mxu0 0.0
    %270 = vmatprep.subr.mxu0 0.0
    %271 = vmatpush1.msra.mxu0 0.0
    %272 = vmatprep.subr.mxu0 0.0
    %273 = vmatpush1.msra.mxu0 0.0
    %274 = vmatprep.subr.mxu0 0.0
    %275 = vmatpush1.msra.mxu0 0.0
    %276 = vmatprep.subr.mxu0 0.0
    %277 = vmatpush1.msra.mxu0 0.0
    %278 = vmatprep.subr.mxu0 0.0
    %279 = vmatpush1.msra.mxu0 0.0
    %280 = vmatprep.subr.mxu0 0.0
    %281 = vmatpush1.msra.mxu0 0.0
    %282 = vmatprep.subr.mxu0 0.0
    %283 = vmatpush1.msra.mxu0 0.0
    %284 = vmatprep.subr.mxu0 0.0
    %285 = vmatpush1.msra.mxu0 0.0
    %286 = vmatprep.subr.mxu0 0.0
    %287 = vmatpush1.msra.mxu0 0.0
    %288 = vmatprep.subr.mxu0 0.0
    %289 = vmatpush1.msra.mxu0 0.0
    %290 = vmatprep.subr.mxu0 0.0
    %291 = vmatpush1.msra.mxu0 0.0
    %292 = vmatprep.subr.mxu0 0.0
    %293 = vmatpush1.msra.mxu0 0.0
    %294 = vmatprep.subr.mxu0 0.0
    %295 = vmatpush1.msra.mxu0 0.0
    %296 = vmatprep.subr.mxu0 0.0
    %297 = vmatpush1.msra.mxu0 0.0
    %298 = vmatprep.subr.mxu0 0.0
    %299 = vmatpush1.msra.mxu0 0.0
    %300 = vmatprep.subr.mxu0 0.0
    %301 = vmatpush1.msra.mxu0 0.0
    %302 = vmatprep.subr.mxu0 0.0
    %303 = vmatpush1.msra.mxu0 0.0
    %304 = vmatprep.subr.mxu0 0.0
    %305 = vmatpush1.msra.mxu0 0.0
    %306 = vmatprep.subr.mxu0 0.0
    %307 = vmatpush1.msra.mxu0 0.0
    %308 = vmatprep.subr.mxu0 0.0
    %309 = vmatpush1.msra.mxu0 0.0
    %310 = vmatprep.subr.mxu0 0.0
    %311 = vmatpush1.msra.mxu0 0.0
    %312 = vmatprep.subr.mxu0 0.0
    %313 = vmatpush1.msra.mxu0 0.0
    %314 = vmatprep.subr.mxu0 0.0
    %315 = vmatpush1.msra.mxu0 0.0
    %316 = vmatprep.subr.mxu0 0.0
    %317 = vmatpush1.msra.mxu0 0.0
    %318 = vmatprep.subr.mxu0 0.0
    %319 = vmatpush1.msra.mxu0 0.0
    %320 = vmatprep.mubr.f32.mxu0 0.0
    %321 = vmatmul.mubr.f32.gmra.mrb[0].mxu0 %v245
    %v322 = vpop.f32.mrb[0].mxu0
    %v323 = vadd.f32 %v226, %v322
    %v324 = vpop.f32.mrb[0].mxu0
    %v325 = vadd.f32 %v226, %v324
    %326 = vmatprep.mubr.f32.mxu0 0.0
    %327 = vmatmul.mubr.f32.gmra.mrb[0].mxu0 %v248
    %v328 = vpop.f32.mrb[0].mxu0
    %v329 = vadd.f32 %v231, %v328
    %v330 = vpop.f32.mrb[0].mxu0
    %v331 = vadd.f32 %v231, %v330
    %332 = vmatprep.mubr.f32.mxu0 0.0
    %333 = vmatmul.mubr.f32.gmra.mrb[0].mxu0 %v251
    %v334 = vpop.f32.mrb[0].mxu0
    %v335 = vadd.f32 %v236, %v334
    %v336 = vpop.f32.mrb[0].mxu0
    %v337 = vadd.f32 %v236, %v336
    %338 = vmatprep.mubr.f32.mxu0 0.0
    %339 = vmatmul.mubr.f32.gmra.mrb[0].mxu0 %v254
    %v340 = vpop.f32.mrb[0].mxu0
    %v341 = vadd.f32 %v241, %v340
    %v342 = vpop.f32.mrb[0].mxu0
    %v343 = vadd.f32 %v241, %v342
    %344 = vdwg.mxu0
    %345 = vmatprep.subr.mxu0 0.0
    %346 = vmatpush1.msra.mxu0 %v205
    %347 = vmatprep.subr.mxu0 0.0
    %348 = vmatpush1.msra.mxu0 %v208
    %349 = vmatprep.subr.mxu0 0.0
    %350 = vmatpush1.msra.mxu0 %v211
    %351 = vmatprep.subr.mxu0 0.0
    %352 = vmatpush1.msra.mxu0 %v214
    %353 = vmatprep.subr.mxu0 0.0
    %354 = vmatpush1.msra.mxu0 0.0
    %355 = vmatprep.subr.mxu0 0.0
    %356 = vmatpush1.msra.mxu0 0.0
    %357 = vmatprep.subr.mxu0 0.0
    %358 = vmatpush1.msra.mxu0 0.0
    %359 = vmatprep.subr.mxu0 0.0
    %360 = vmatpush1.msra.mxu0 0.0
    %361 = vmatprep.subr.mxu0 0.0
    %362 = vmatpush1.msra.mxu0 0.0
    %363 = vmatprep.subr.mxu0 0.0
    %364 = vmatpush1.msra.mxu0 0.0
    %365 = vmatprep.subr.mxu0 0.0
    %366 = vmatpush1.msra.mxu0 0.0
    %367 = vmatprep.subr.mxu0 0.0
    %368 = vmatpush1.msra.mxu0 0.0
    %369 = vmatprep.subr.mxu0 0.0
    %370 = vmatpush1.msra.mxu0 0.0
    %371 = vmatprep.subr.mxu0 0.0
    %372 = vmatpush1.msra.mxu0 0.0
    %373 = vmatprep.subr.mxu0 0.0
    %374 = vmatpush1.msra.mxu0 0.0
    %375 = vmatprep.subr.mxu0 0.0
    %376 = vmatpush1.msra.mxu0 0.0
    %377 = vmatprep.subr.mxu0 0.0
    %378 = vmatpush1.msra.mxu0 0.0
    %379 = vmatprep.subr.mxu0 0.0
    %380 = vmatpush1.msra.mxu0 0.0
    %381 = vmatprep.subr.mxu0 0.0
    %382 = vmatpush1.msra.mxu0 0.0
    %383 = vmatprep.subr.mxu0 0.0
    %384 = vmatpush1.msra.mxu0 0.0
    %385 = vmatprep.subr.mxu0 0.0
    %386 = vmatpush1.msra.mxu0 0.0
    %387 = vmatprep.subr.mxu0 0.0
    %388 = vmatpush1.msra.mxu0 0.0
    %389 = vmatprep.subr.mxu0 0.0
    %390 = vmatpush1.msra.mxu0 0.0
    %391 = vmatprep.subr.mxu0 0.0
    %392 = vmatpush1.msra.mxu0 0.0
    %393 = vmatprep.subr.mxu0 0.0
    %394 = vmatpush1.msra.mxu0 0.0
    %395 = vmatprep.subr.mxu0 0.0
    %396 = vmatpush1.msra.mxu0 0.0
    %397 = vmatprep.subr.mxu0 0.0
    %398 = vmatpush1.msra.mxu0 0.0
    %399 = vmatprep.subr.mxu0 0.0
    %400 = vmatpush1.msra.mxu0 0.0
    %401 = vmatprep.subr.mxu0 0.0
    %402 = vmatpush1.msra.mxu0 0.0
    %403 = vmatprep.subr.mxu0 0.0
    %404 = vmatpush1.msra.mxu0 0.0
    %405 = vmatprep.subr.mxu0 0.0
    %406 = vmatpush1.msra.mxu0 0.0
    %407 = vmatprep.subr.mxu0 0.0
    %408 = vmatpush1.msra.mxu0 0.0
    %409 = vmatprep.mubr.f32.mxu0 0.0
    %410 = vmatmul.mubr.f32.gmra.mrb[0].mxu0 %v245
    %v411 = vpop.f32.mrb[0].mxu0
    %v412 = vadd.f32 %v226, %v411
    %v413 = vpop.f32.mrb[0].mxu0
    %414 = vmatprep.mubr.f32.mxu0 0.0
    %415 = vmatmul.mubr.f32.gmra.mrb[0].mxu0 %v248
    %v416 = vpop.f32.mrb[0].mxu0
    %v417 = vadd.f32 %v231, %v416
    %v418 = vpop.f32.mrb[0].mxu0
    %419 = vmatprep.mubr.f32.mxu0 0.0
    %420 = vmatmul.mubr.f32.gmra.mrb[0].mxu0 %v251
    %v421 = vpop.f32.mrb[0].mxu0
    %v422 = vadd.f32 %v236, %v421
    %v423 = vpop.f32.mrb[0].mxu0
    %424 = vmatprep.mubr.f32.mxu0 0.0
    %425 = vmatmul.mubr.f32.gmra.mrb[0].mxu0 %v254
    %v426 = vpop.f32.mrb[0].mxu0
    %v427 = vadd.f32 %v241, %v426
    %v428 = vpop.f32.mrb[0].mxu0
    %429 = vdwg.mxu0
    %v430 = vtanh.pop %v323
    %v431 = vtanh.pop %v325
    %v432 = vtanh.pop %v412
    %v433 = vtanh.pop %v329
    %v434 = vtanh.pop %v331
    %v435 = vtanh.pop %v417
    %v436 = vtanh.pop %v335
    %v437 = vtanh.pop %v337
    %v438 = vtanh.pop %v422
    %v439 = vtanh.pop %v341
    %v440 = vtanh.pop %v343
    %v441 = vtanh.pop %v427
    %v442 = vld [vmem:[%s5] sm:$0xff]
    %v443 = vld [vmem:[%s5 + $0x8] sm:$0xff]
    %v444 = vld [vmem:[%s5 + $0x10] sm:$0xff]
    %v445 = vld [vmem:[%s5 + $0x18] sm:$0xff]
    %v446 = vld [vmem:[%s6] sm:$0xff]
    %v447 = vld [vmem:[%s6 + $0x8] sm:$0xff]
    %v448 = vld [vmem:[%s6 + $0x10] sm:$0xff]
    %v449 = vld [vmem:[%s6 + $0x18] sm:$0xff]
    %451 = vset.pattern.permute.xlu0 0
    %452 = vperm.xlu0 %451, %v446
    %v453 = vpop.permute.xlu0 %452
    %456 = vset.pattern.permute.xlu0 0
    %457 = vperm.xlu0 %456, %v447
    %v458 = vpop.permute.xlu0 %457
    %461 = vset.pattern.permute.xlu0 0
    %462 = vperm.xlu0 %461, %v448
    %v463 = vpop.permute.xlu0 %462
    %466 = vset.pattern.permute.xlu0 0
    %467 = vperm.xlu0 %466, %v449
    %v468 = vpop.permute.xlu0 %467
    %v471 = vsel %vm243, %v442, 0
    %v474 = vsel %vm243, %v443, 0
    %v477 = vsel %vm243, %v444, 0
    %v480 = vsel %vm243, %v445, 0
    %482 = vmatprep.subr.mxu0 %v431
    %483 = vmatpush1.msra.mxu0 %v430
    %484 = vmatprep.subr.mxu0 %v434
    %485 = vmatpush1.msra.mxu0 %v433
    %486 = vmatprep.subr.mxu0 %v437
    %487 = vmatpush1.msra.mxu0 %v436
    %488 = vmatprep.subr.mxu0 %v440
    %489 = vmatpush1.msra.mxu0 %v439
    %490 = vmatprep.subr.mxu0 0.0
    %491 = vmatpush1.msra.mxu0 0.0
    %492 = vmatprep.subr.mxu0 0.0
    %493 = vmatpush1.msra.mxu0 0.0
    %494 = vmatprep.subr.mxu0 0.0
    %495 = vmatpush1.msra.mxu0 0.0
    %496 = vmatprep.subr.mxu0 0.0
    %497 = vmatpush1.msra.mxu0 0.0
    %498 = vmatprep.subr.mxu0 0.0
    %499 = vmatpush1.msra.mxu0 0.0
    %500 = vmatprep.subr.mxu0 0.0
    %501 = vmatpush1.msra.mxu0 0.0
    %502 = vmatprep.subr.mxu0 0.0
    %503 = vmatpush1.msra.mxu0 0.0
    %504 = vmatprep.subr.mxu0 0.0
    %505 = vmatpush1.msra.mxu0 0.0
    %506 = vmatprep.subr.mxu0 0.0
    %507 = vmatpush1.msra.mxu0 0.0
    %508 = vmatprep.subr.mxu0 0.0
    %509 = vmatpush1.msra.mxu0 0.0
    %510 = vmatprep.subr.mxu0 0.0
    %511 = vmatpush1.msra.mxu0 0.0
    %512 = vmatprep.subr.mxu0 0.0
    %513 = vmatpush1.msra.mxu0 0.0
    %514 = vmatprep.subr.mxu0 0.0
    %515 = vmatpush1.msra.mxu0 0.0
    %516 = vmatprep.subr.mxu0 0.0
    %517 = vmatpush1.msra.mxu0 0.0
    %518 = vmatprep.subr.mxu0 0.0
    %519 = vmatpush1.msra.mxu0 0.0
    %520 = vmatprep.subr.mxu0 0.0
    %521 = vmatpush1.msra.mxu0 0.0
    %522 = vmatprep.subr.mxu0 0.0
    %523 = vmatpush1.msra.mxu0 0.0
    %524 = vmatprep.subr.mxu0 0.0
    %525 = vmatpush1.msra.mxu0 0.0
    %526 = vmatprep.subr.mxu0 0.0
    %527 = vmatpush1.msra.mxu0 0.0
    %528 = vmatprep.subr.mxu0 0.0
    %529 = vmatpush1.msra.mxu0 0.0
    %530 = vmatprep.subr.mxu0 0.0
    %531 = vmatpush1.msra.mxu0 0.0
    %532 = vmatprep.subr.mxu0 0.0
    %533 = vmatpush1.msra.mxu0 0.0
    %534 = vmatprep.subr.mxu0 0.0
    %535 = vmatpush1.msra.mxu0 0.0
    %536 = vmatprep.subr.mxu0 0.0
    %537 = vmatpush1.msra.mxu0 0.0
    %538 = vmatprep.subr.mxu0 0.0
    %539 = vmatpush1.msra.mxu0 0.0
    %540 = vmatprep.subr.mxu0 0.0
    %541 = vmatpush1.msra.mxu0 0.0
    %542 = vmatprep.subr.mxu0 0.0
    %543 = vmatpush1.msra.mxu0 0.0
    %544 = vmatprep.subr.mxu0 0.0
    %545 = vmatpush1.msra.mxu0 0.0
    %546 = vmatprep.mubr.f32.mxu0 0.0
    %547 = vmatmul.mubr.f32.gmra.mrb[0].mxu0 %v471
    %v548 = vpop.f32.mrb[0].mxu0
    %v549 = vadd.f32 %v453, %v548
    %v550 = vpop.f32.mrb[0].mxu0
    %v551 = vadd.f32 %v453, %v550
    %552 = vmatprep.mubr.f32.mxu0 0.0
    %553 = vmatmul.mubr.f32.gmra.mrb[0].mxu0 %v474
    %v554 = vpop.f32.mrb[0].mxu0
    %v555 = vadd.f32 %v458, %v554
    %v556 = vpop.f32.mrb[0].mxu0
    %v557 = vadd.f32 %v458, %v556
    %558 = vmatprep.mubr.f32.mxu0 0.0
    %559 = vmatmul.mubr.f32.gmra.mrb[0].mxu0 %v477
    %v560 = vpop.f32.mrb[0].mxu0
    %v561 = vadd.f32 %v463, %v560
    %v562 = vpop.f32.mrb[0].mxu0
    %v563 = vadd.f32 %v463, %v562
    %564 = vmatprep.mubr.f32.mxu0 0.0
    %565 = vmatmul.mubr.f32.gmra.mrb[0].mxu0 %v480
    %v566 = vpop.f32.mrb[0].mxu0
    %v567 = vadd.f32 %v468, %v566
    %v568 = vpop.f32.mrb[0].mxu0
    %v569 = vadd.f32 %v468, %v568
    %570 = vdwg.mxu0
    %571 = vmatprep.subr.mxu0 0.0
    %572 = vmatpush1.msra.mxu0 %v432
    %573 = vmatprep.subr.mxu0 0.0
    %574 = vmatpush1.msra.mxu0 %v435
    %575 = vmatprep.subr.mxu0 0.0
    %576 = vmatpush1.msra.mxu0 %v438
    %577 = vmatprep.subr.mxu0 0.0
    %578 = vmatpush1.msra.mxu0 %v441
    %579 = vmatprep.subr.mxu0 0.0
    %580 = vmatpush1.msra.mxu0 0.0
    %581 = vmatprep.subr.mxu0 0.0
    %582 = vmatpush1.msra.mxu0 0.0
    %583 = vmatprep.subr.mxu0 0.0
    %584 = vmatpush1.msra.mxu0 0.0
    %585 = vmatprep.subr.mxu0 0.0
    %586 = vmatpush1.msra.mxu0 0.0
    %587 = vmatprep.subr.mxu0 0.0
    %588 = vmatpush1.msra.mxu0 0.0
    %589 = vmatprep.subr.mxu0 0.0
    %590 = vmatpush1.msra.mxu0 0.0
    %591 = vmatprep.subr.mxu0 0.0
    %592 = vmatpush1.msra.mxu0 0.0
    %593 = vmatprep.subr.mxu0 0.0
    %594 = vmatpush1.msra.mxu0 0.0
    %595 = vmatprep.subr.mxu0 0.0
    %596 = vmatpush1.msra.mxu0 0.0
    %597 = vmatprep.subr.mxu0 0.0
    %598 = vmatpush1.msra.mxu0 0.0
    %599 = vmatprep.subr.mxu0 0.0
    %600 = vmatpush1.msra.mxu0 0.0
    %601 = vmatprep.subr.mxu0 0.0
    %602 = vmatpush1.msra.mxu0 0.0
    %603 = vmatprep.subr.mxu0 0.0
    %604 = vmatpush1.msra.mxu0 0.0
    %605 = vmatprep.subr.mxu0 0.0
    %606 = vmatpush1.msra.mxu0 0.0
    %607 = vmatprep.subr.mxu0 0.0
    %608 = vmatpush1.msra.mxu0 0.0
    %609 = vmatprep.subr.mxu0 0.0
    %610 = vmatpush1.msra.mxu0 0.0
    %611 = vmatprep.subr.mxu0 0.0
    %612 = vmatpush1.msra.mxu0 0.0
    %613 = vmatprep.subr.mxu0 0.0
    %614 = vmatpush1.msra.mxu0 0.0
    %615 = vmatprep.subr.mxu0 0.0
    %616 = vmatpush1.msra.mxu0 0.0
    %617 = vmatprep.subr.mxu0 0.0
    %618 = vmatpush1.msra.mxu0 0.0
    %619 = vmatprep.subr.mxu0 0.0
    %620 = vmatpush1.msra.mxu0 0.0
    %621 = vmatprep.subr.mxu0 0.0
    %622 = vmatpush1.msra.mxu0 0.0
    %623 = vmatprep.subr.mxu0 0.0
    %624 = vmatpush1.msra.mxu0 0.0
    %625 = vmatprep.subr.mxu0 0.0
    %626 = vmatpush1.msra.mxu0 0.0
    %627 = vmatprep.subr.mxu0 0.0
    %628 = vmatpush1.msra.mxu0 0.0
    %629 = vmatprep.subr.mxu0 0.0
    %630 = vmatpush1.msra.mxu0 0.0
    %631 = vmatprep.subr.mxu0 0.0
    %632 = vmatpush1.msra.mxu0 0.0
    %633 = vmatprep.subr.mxu0 0.0
    %634 = vmatpush1.msra.mxu0 0.0
    %635 = vmatprep.mubr.f32.mxu0 0.0
    %636 = vmatmul.mubr.f32.gmra.mrb[0].mxu0 %v471
    %v637 = vpop.f32.mrb[0].mxu0
    %v638 = vadd.f32 %v453, %v637
    %v639 = vpop.f32.mrb[0].mxu0
    %640 = vmatprep.mubr.f32.mxu0 0.0
    %641 = vmatmul.mubr.f32.gmra.mrb[0].mxu0 %v474
    %v642 = vpop.f32.mrb[0].mxu0
    %v643 = vadd.f32 %v458, %v642
    %v644 = vpop.f32.mrb[0].mxu0
    %645 = vmatprep.mubr.f32.mxu0 0.0
    %646 = vmatmul.mubr.f32.gmra.mrb[0].mxu0 %v477
    %v647 = vpop.f32.mrb[0].mxu0
    %v648 = vadd.f32 %v463, %v647
    %v649 = vpop.f32.mrb[0].mxu0
    %650 = vmatprep.mubr.f32.mxu0 0.0
    %651 = vmatmul.mubr.f32.gmra.mrb[0].mxu0 %v480
    %v652 = vpop.f32.mrb[0].mxu0
    %v653 = vadd.f32 %v468, %v652
    %v654 = vpop.f32.mrb[0].mxu0
    %655 = vdwg.mxu0
    %v656 = vtanh.pop %v549
    %v657 = vtanh.pop %v551
    %v658 = vtanh.pop %v638
    %v659 = vtanh.pop %v555
    %v660 = vtanh.pop %v557
    %v661 = vtanh.pop %v643
    %v662 = vtanh.pop %v561
    %v663 = vtanh.pop %v563
    %v664 = vtanh.pop %v648
    %v665 = vtanh.pop %v567
    %v666 = vtanh.pop %v569
    %v667 = vtanh.pop %v653
    %v668 = vld [vmem:[%s7] sm:$0x1]
    %v669 = vld [vmem:[#allocation2] sm:$0x1]
    %671 = vset.pattern.permute.xlu0 0
    %672 = vperm.xlu0 %671, %v669
    %v673 = vpop.permute.xlu0 %672
    %v675 = vlaneseq
    %v676 = vshrl.u32 %v675, 7
    %v677 = vsub.s32 0, %v676
    %v678 = vrot.slane %v673, %v677
    %v680 = vsel %vm243, %v668, 0
    %682 = vmatprep.subr.mxu0 %v657
    %683 = vmatpush1.msra.mxu0 %v656
    %684 = vmatprep.subr.mxu0 %v660
    %685 = vmatpush1.msra.mxu0 %v659
    %686 = vmatprep.subr.mxu0 %v663
    %687 = vmatpush1.msra.mxu0 %v662
    %688 = vmatprep.subr.mxu0 %v666
    %689 = vmatpush1.msra.mxu0 %v665
    %690 = vmatprep.subr.mxu0 0.0
    %691 = vmatpush1.msra.mxu0 0.0
    %692 = vmatprep.subr.mxu0 0.0
    %693 = vmatpush1.msra.mxu0 0.0
    %694 = vmatprep.subr.mxu0 0.0
    %695 = vmatpush1.msra.mxu0 0.0
    %696 = vmatprep.subr.mxu0 0.0
    %697 = vmatpush1.msra.mxu0 0.0
    %698 = vmatprep.subr.mxu0 0.0
    %699 = vmatpush1.msra.mxu0 0.0
    %700 = vmatprep.subr.mxu0 0.0
    %701 = vmatpush1.msra.mxu0 0.0
    %702 = vmatprep.subr.mxu0 0.0
    %703 = vmatpush1.msra.mxu0 0.0
    %704 = vmatprep.subr.mxu0 0.0
    %705 = vmatpush1.msra.mxu0 0.0
    %706 = vmatprep.subr.mxu0 0.0
    %707 = vmatpush1.msra.mxu0 0.0
    %708 = vmatprep.subr.mxu0 0.0
    %709 = vmatpush1.msra.mxu0 0.0
    %710 = vmatprep.subr.mxu0 0.0
    %711 = vmatpush1.msra.mxu0 0.0
    %712 = vmatprep.subr.mxu0 0.0
    %713 = vmatpush1.msra.mxu0 0.0
    %714 = vmatprep.subr.mxu0 0.0
    %715 = vmatpush1.msra.mxu0 0.0
    %716 = vmatprep.subr.mxu0 0.0
    %717 = vmatpush1.msra.mxu0 0.0
    %718 = vmatprep.subr.mxu0 0.0
    %719 = vmatpush1.msra.mxu0 0.0
    %720 = vmatprep.subr.mxu0 0.0
    %721 = vmatpush1.msra.mxu0 0.0
    %722 = vmatprep.subr.mxu0 0.0
    %723 = vmatpush1.msra.mxu0 0.0
    %724 = vmatprep.subr.mxu0 0.0
    %725 = vmatpush1.msra.mxu0 0.0
    %726 = vmatprep.subr.mxu0 0.0
    %727 = vmatpush1.msra.mxu0 0.0
    %728 = vmatprep.subr.mxu0 0.0
    %729 = vmatpush1.msra.mxu0 0.0
    %730 = vmatprep.subr.mxu0 0.0
    %731 = vmatpush1.msra.mxu0 0.0
    %732 = vmatprep.subr.mxu0 0.0
    %733 = vmatpush1.msra.mxu0 0.0
    %734 = vmatprep.subr.mxu0 0.0
    %735 = vmatpush1.msra.mxu0 0.0
    %736 = vmatprep.subr.mxu0 0.0
    %737 = vmatpush1.msra.mxu0 0.0
    %738 = vmatprep.subr.mxu0 0.0
    %739 = vmatpush1.msra.mxu0 0.0
    %740 = vmatprep.subr.mxu0 0.0
    %741 = vmatpush1.msra.mxu0 0.0
    %742 = vmatprep.subr.mxu0 0.0
    %743 = vmatpush1.msra.mxu0 0.0
    %744 = vmatprep.subr.mxu0 0.0
    %745 = vmatpush1.msra.mxu0 0.0
    %746 = vmatprep.mubr.f32.mxu0 0.0
    %747 = vmatmul.mubr.f32.gmra.mrb[0].mxu0 %v680
    %v748 = vpop.f32.mrb[0].mxu0
    %v749 = vadd.f32 %v678, %v748
    %v750 = vpop.f32.mrb[0].mxu0
    %v751 = vadd.f32 %v678, %v750
    %752 = vdwg.mxu0
    %753 = vmatprep.subr.mxu0 0.0
    %754 = vmatpush1.msra.mxu0 %v658
    %755 = vmatprep.subr.mxu0 0.0
    %756 = vmatpush1.msra.mxu0 %v661
    %757 = vmatprep.subr.mxu0 0.0
    %758 = vmatpush1.msra.mxu0 %v664
    %759 = vmatprep.subr.mxu0 0.0
    %760 = vmatpush1.msra.mxu0 %v667
    %761 = vmatprep.subr.mxu0 0.0
    %762 = vmatpush1.msra.mxu0 0.0
    %763 = vmatprep.subr.mxu0 0.0
    %764 = vmatpush1.msra.mxu0 0.0
    %765 = vmatprep.subr.mxu0 0.0
    %766 = vmatpush1.msra.mxu0 0.0
    %767 = vmatprep.subr.mxu0 0.0
    %768 = vmatpush1.msra.mxu0 0.0
    %769 = vmatprep.subr.mxu0 0.0
    %770 = vmatpush1.msra.mxu0 0.0
    %771 = vmatprep.subr.mxu0 0.0
    %772 = vmatpush1.msra.mxu0 0.0
    %773 = vmatprep.subr.mxu0 0.0
    %774 = vmatpush1.msra.mxu0 0.0
    %775 = vmatprep.subr.mxu0 0.0
    %776 = vmatpush1.msra.mxu0 0.0
    %777 = vmatprep.subr.mxu0 0.0
    %778 = vmatpush1.msra.mxu0 0.0
    %779 = vmatprep.subr.mxu0 0.0
    %780 = vmatpush1.msra.mxu0 0.0
    %781 = vmatprep.subr.mxu0 0.0
    %782 = vmatpush1.msra.mxu0 0.0
    %783 = vmatprep.subr.mxu0 0.0
    %784 = vmatpush1.msra.mxu0 0.0
    %785 = vmatprep.subr.mxu0 0.0
    %786 = vmatpush1.msra.mxu0 0.0
    %787 = vmatprep.subr.mxu0 0.0
    %788 = vmatpush1.msra.mxu0 0.0
    %789 = vmatprep.subr.mxu0 0.0
    %790 = vmatpush1.msra.mxu0 0.0
    %791 = vmatprep.subr.mxu0 0.0
    %792 = vmatpush1.msra.mxu0 0.0
    %793 = vmatprep.subr.mxu0 0.0
    %794 = vmatpush1.msra.mxu0 0.0
    %795 = vmatprep.subr.mxu0 0.0
    %796 = vmatpush1.msra.mxu0 0.0
    %797 = vmatprep.subr.mxu0 0.0
    %798 = vmatpush1.msra.mxu0 0.0
    %799 = vmatprep.subr.mxu0 0.0
    %800 = vmatpush1.msra.mxu0 0.0
    %801 = vmatprep.subr.mxu0 0.0
    %802 = vmatpush1.msra.mxu0 0.0
    %803 = vmatprep.subr.mxu0 0.0
    %804 = vmatpush1.msra.mxu0 0.0
    %805 = vmatprep.subr.mxu0 0.0
    %806 = vmatpush1.msra.mxu0 0.0
    %807 = vmatprep.subr.mxu0 0.0
    %808 = vmatpush1.msra.mxu0 0.0
    %809 = vmatprep.subr.mxu0 0.0
    %810 = vmatpush1.msra.mxu0 0.0
    %811 = vmatprep.subr.mxu0 0.0
    %812 = vmatpush1.msra.mxu0 0.0
    %813 = vmatprep.subr.mxu0 0.0
    %814 = vmatpush1.msra.mxu0 0.0
    %815 = vmatprep.subr.mxu0 0.0
    %816 = vmatpush1.msra.mxu0 0.0
    %817 = vmatprep.mubr.f32.mxu0 0.0
    %818 = vmatmul.mubr.f32.gmra.mrb[0].mxu0 %v680
    %v819 = vpop.f32.mrb[0].mxu0
    %v820 = vadd.f32 %v678, %v819
    %v821 = vpop.f32.mrb[0].mxu0
    %822 = vdwg.mxu0
    %v826 = vcombine.low %v749, %v751
    %v828 = vunpack.c.l.s4 1966171168
    %v829 = vunpack.c.0.s8 %v828
    %v830 = vlaneseq
    %v831 = vshrl.u32 %v830, 7
    %v832 = vsub.s32 %v829, %v831
    %v833 = vrot.slane %v826, %v832
    %v835 = vunpack.c.l.s4 1966171168
    %v836 = vunpack.c.0.s8 %v835
    %v837 = vlaneseq
    %v838 = vshrl.u32 %v837, 7
    %v839 = vsub.s32 %v836, %v838
    %v840 = vrot.slane %v820, %v839
    %v841 = vcombine.low %v833, %v840
    %v843 = vunpack.c.l.s4 1966171168
    %v844 = vunpack.c.0.s8 %v843
    %v845 = vlaneseq
    %v846 = vshrl.u32 %v845, 7
    %v847 = vsub.s32 %v844, %v846
    %v848 = vrot.slane %v841, %v847
    %v850 = vlaneseq
    %vm851 = vcmp.ge.s32.totalorder %v850, 0
    %vm852 = vcmp.lt.s32.totalorder %v850, 384
    %vm853 = vmand %vm851, %vm852
    %854 = vst.msk [vmem:[#allocation3] sm:$0x7] %vm853, %v848
    // Predicated region
    $region38: #{tpu_custom_call.1} parent=1 // pred_check
      _
    $region39: #{tpu_custom_call.1} parent=1 // pred_check_branch
      %856 = sbr.rel (0) target = $region41
    $region40: #{tpu_custom_call.1} parent=1 // pred_region
      %s858 = ssub.s32 48, 48
      %859 = vsyncadd [#allocation4], %s858
      %s861 = sshll.u32 [#allocation3], 4
      %s862 = int_to_ptr.vmem [resolvable:$true] %s861
      %864 = dma.vmem_to_hbm [thread:$0]  %s862, 48, %s9, [#allocation4]
    $region41: #{tpu_custom_call.1} parent=1 // pred_fallthru
      _
    // Predicated region
    $region42: #{tpu_custom_call.1} parent=1 // pred_check
      _
    $region43: #{tpu_custom_call.1} parent=1 // pred_check_branch
      %866 = sbr.rel (0) target = $region45
    $region44: #{tpu_custom_call.1} parent=1 // pred_region
      %867 = dma.done [#allocation4], 48
    $region45: #{tpu_custom_call.1} parent=1 // pred_fallthru
      _
    %868 = vsyncpa [#allocation4], 1

</llo_original>
